<compile_context>
chip_gen: v7x
topology: tpu7x:2x2x1
jax: 0.10.0
libtpu: 0.0.40
codegen_flags: <defaults>
</compile_context>

<pallas_src>
import jax
import jax.numpy as jnp
from jax.experimental import pallas as pl
from jax.experimental.pallas import tpu as pltpu


# ----------------------------------------------------------------------------- kernels


def _input_proj_kernel(x_ref, w_ih_t_ref, b_ref, pg_ref):
    """Pre-gates for a block of rows: pg = x @ W_ih^T + (b_ih + b_hh).

    x_ref:      (RB, E)   bf16 embedded tokens (rows = flattened S*B)
    w_ih_t_ref: (E, 4H)   bf16 pre-transposed input-hidden weight
    b_ref:      (1, 4H)   f32 combined bias
    pg_ref:     (RB, 4H)  f32 output
    """
    pg_ref[...] = (
        jnp.dot(x_ref[...], w_ih_t_ref[...], preferred_element_type=jnp.float32)
        + b_ref[...]
    )


def _lstm_recurrent_kernel(pg_ref, w_hh_t_ref, h_out_ref, h_sc, c_sc):
    """Serial LSTM recurrence over a chunk of T timesteps.

    pg_ref:     (T, B, 4H) f32  precomputed input gates (x@W_ih^T + bias)
    w_hh_t_ref: (H, 4H)    bf16 pre-transposed hidden-hidden weight
    h_out_ref:  (T, B, H)  bf16 hidden states for this chunk
    h_sc, c_sc: (B, H)     f32  persistent state carried across grid steps
    """
    @pl.when(pl.program_id(0) == 0)
    def _init():
        h_sc[...] = jnp.zeros_like(h_sc)
        c_sc[...] = jnp.zeros_like(c_sc)

    n_t = pg_ref.shape[0]          # static chunk length T
    hidden = h_sc.shape[1]
    # Load the (small) recurrent weight once per chunk, not once per step.
    # (pl.Buffered(1) on its BlockSpec would also drop the redundant double-buffer for
    #  this constant-index operand; omitted here for broad version compatibility.)
    w_hh_t = w_hh_t_ref[...]

    def step(t, carry):
        h_prev = h_sc[...]
        c_prev = c_sc[...]
        # Recurrent matmul (MXU, f32 accumulation) + precomputed input gates.
        gates = pg_ref[t] + jnp.dot(
            h_prev.astype(w_hh_t.dtype), w_hh_t, preferred_element_type=jnp.float32
        )                                                   # (B, 4H)
        # PyTorch gate order i, f, g, o. With H a multiple of 128 these slices are
        # lane-aligned (no masked sub-vreg selects). Sigmoid/tanh run on the EUP and
        # overlap with the next step's MXU work thanks to the unrolled loop.
        i_g = jax.nn.sigmoid(gates[:, 0 * hidden:1 * hidden])
        f_g = jax.nn.sigmoid(gates[:, 1 * hidden:2 * hidden])
        g_g = jnp.tanh(gates[:, 2 * hidden:3 * hidden])
        o_g = jax.nn.sigmoid(gates[:, 3 * hidden:4 * hidden])
        c_new = f_g * c_prev + i_g * g_g
        h_new = o_g * jnp.tanh(c_new)
        c_sc[...] = c_new
        h_sc[...] = h_new
        h_out_ref[t] = h_new.astype(h_out_ref.dtype)
        return carry

    jax.lax.fori_loop(0, n_t, step, 0, unroll=True)


def _tied_proj_kernel(h_ref, w_out_t_ref, o_ref):
    """Tied-weight output projection block: logits = h @ W_emb^T.

    h_ref:       (RB, H)  bf16 hidden states (rows = flattened S*B)
    w_out_t_ref: (H, VB)  bf16 pre-transposed tied embedding weight tile
    o_ref:       (RB, VB) f32 logits tile
    """
    o_ref[...] = jnp.dot(h_ref[...], w_out_t_ref[...],
                         preferred_element_type=jnp.float32)


# ----------------------------------------------------------------------------- wrapper


def _largest_divisor_leq(n, cap, align):
    """Largest divisor of n that is <= cap and (multiple of `align` or == n)."""
    for b in range(min(n, cap), 0, -1):
        if n % b == 0 and (b % align == 0 or b == n):
            return b
    return n


def lm_lstm_forward(tokens, emb_weight, w_ih, w_hh, b_ih, b_hh, *, time_block=32):
    """tokens: (B, S) int32. Returns logits of shape (B, V, S) (matches PyTorch)."""
    B, S = tokens.shape
    V, E = emb_weight.shape
    H = w_hh.shape[1]
    assert E == H, "weight tying requires emb_size == hidden_size"
    assert w_ih.shape == (4 * H, E) and w_hh.shape == (4 * H, H)

    # --- XLA glue: embedding gather, time-major layout ------------------------------
    emb = emb_weight[tokens].astype(jnp.bfloat16)        # (B, S, E)
    emb_tm = jnp.transpose(emb, (1, 0, 2))               # (S, B, E)  time-major
    rows = S * B
    emb_2d = emb_tm.reshape(rows, E)                     # (S*B, E)

    # Pre-transpose weights once (no in-kernel .T); bf16 for the MXU, f32 accumulation.
    w_ih_t = jnp.transpose(w_ih).astype(jnp.bfloat16)        # (E, 4H)
    w_hh_t = jnp.transpose(w_hh).astype(jnp.bfloat16)        # (H, 4H)
    w_out_t = jnp.transpose(emb_weight).astype(jnp.bfloat16)  # (H, V)  tied weight
    bias = (b_ih + b_hh).reshape(1, 4 * H).astype(jnp.float32)

    # --- 1) input projection: one big parallel matmul over all timesteps ------------
    rb = _largest_divisor_leq(rows, 512, 8)
    pre_gates_2d = pl.pallas_call(
        _input_proj_kernel,
        out_shape=jax.ShapeDtypeStruct((rows, 4 * H), jnp.float32),
        grid=(rows // rb,),
        in_specs=[
            pl.BlockSpec((rb, E), lambda i: (i, 0)),
            pl.BlockSpec((E, 4 * H), lambda i: (0, 0)),
            pl.BlockSpec((1, 4 * H), lambda i: (0, 0)),
        ],
        out_specs=pl.BlockSpec((rb, 4 * H), lambda i: (i, 0)),
        compiler_params=pltpu.CompilerParams(dimension_semantics=("parallel",)),
    )(emb_2d, w_ih_t, bias)
    pre_gates_tm = pre_gates_2d.reshape(S, B, 4 * H)

    # --- 2) serial recurrence, T timesteps per grid step -----------------------------
    T = _largest_divisor_leq(S, time_block, 1)
    h_tm = pl.pallas_call(
        _lstm_recurrent_kernel,
        out_shape=jax.ShapeDtypeStruct((S, B, H), jnp.bfloat16),
        grid_spec=pltpu.PrefetchScalarGridSpec(
            num_scalar_prefetch=0,
            grid=(S // T,),
            in_specs=[
                pl.BlockSpec((T, B, 4 * H), lambda s: (s, 0, 0)),   # pre-gates chunk
                pl.BlockSpec((H, 4 * H), lambda s: (0, 0)),         # W_hh^T (resident)
            ],
            out_specs=pl.BlockSpec((T, B, H), lambda s: (s, 0, 0)),
            scratch_shapes=[
                pltpu.VMEM((B, H), jnp.float32),   # h state (persists across chunks)
                pltpu.VMEM((B, H), jnp.float32),   # c state
            ],
        ),
        compiler_params=pltpu.CompilerParams(
            dimension_semantics=("arbitrary",),    # time recurrence is inherently serial
        ),
    )(pre_gates_tm, w_hh_t)

    # --- 3) tied output projection: one big parallel matmul, tiled over rows and V ---
    h_2d = h_tm.reshape(rows, H)
    vb = _largest_divisor_leq(V, 2048, 128)
    logits_2d = pl.pallas_call(
        _tied_proj_kernel,
        out_shape=jax.ShapeDtypeStruct((rows, V), jnp.float32),
        grid=(rows // rb, V // vb),
        in_specs=[
            pl.BlockSpec((rb, H), lambda i, j: (i, 0)),
            pl.BlockSpec((H, vb), lambda i, j: (0, j)),
        ],
        out_specs=pl.BlockSpec((rb, vb), lambda i, j: (i, j)),
        compiler_params=pltpu.CompilerParams(
            dimension_semantics=("parallel", "parallel"),   # megacore-shardable
        ),
    )(h_2d, w_out_t)

    logits_tm = logits_2d.reshape(S, B, V)
    # (S, B, V) -> (B, V, S): the module contract requires .permute(0, 2, 1) on (B, S, V).
    return jnp.transpose(logits_tm, (1, 2, 0))


# ----------------------------------------------------------------------------- reference


def _reference_forward(tokens, emb_weight, w_ih, w_hh, b_ih, b_hh):
    """Pure-JAX f32 reference of the same forward pass (for correctness check)."""
    B, S = tokens.shape
    H = w_hh.shape[1]
    emb = emb_weight[tokens]                       # (B, S, E)
    h = jnp.zeros((B, H), jnp.float32)
    c = jnp.zeros((B, H), jnp.float32)
    outs = []
    for t in range(S):
        gates = emb[:, t, :] @ w_ih.T + h @ w_hh.T + (b_ih + b_hh)
        i = jax.nn.sigmoid(gates[:, 0 * H:1 * H])
        f = jax.nn.sigmoid(gates[:, 1 * H:2 * H])
        g = jnp.tanh(gates[:, 2 * H:3 * H])
        o = jax.nn.sigmoid(gates[:, 3 * H:4 * H])
        c = f * c + i * g
        h = o * jnp.tanh(c)
        outs.append(h)
    lstm_out = jnp.stack(outs, axis=1)             # (B, S, H)
    logits = lstm_out @ emb_weight.T               # (B, S, V)
    return jnp.transpose(logits, (0, 2, 1))        # (B, V, S)


if __name__ == "__main__":
    # Small but hardware-friendly shapes: B=8 fills the sublanes, H=128 makes gate
    # slices lane-aligned, V=256 keeps output stores lane-dense. Weight tying forces
    # emb_size == hidden_size.
    B, S = 8, 16
    emb_size = hidden_size = 128
    output_size = 256            # vocab size
    pad_index = 0
    H, E, V = hidden_size, emb_size, output_size

    key = jax.random.PRNGKey(0)
    k_emb, k_wih, k_whh, k_bih, k_bhh, k_tok = jax.random.split(key, 6)

    # nn.Embedding default init ~ N(0,1); padding_idx row zeroed.
    emb_weight = jax.random.normal(k_emb, (V, E), dtype=jnp.float32)
    emb_weight = emb_weight.at[pad_index].set(0.0)

    # nn.LSTM default init ~ U(-1/sqrt(H), 1/sqrt(H)); gate order i, f, g, o.
    bound = 1.0 / (H ** 0.5)
    w_ih = jax.random.uniform(k_wih, (4 * H, E), jnp.float32, -bound, bound)
    w_hh = jax.random.uniform(k_whh, (4 * H, H), jnp.float32, -bound, bound)
    b_ih = jax.random.uniform(k_bih, (4 * H,), jnp.float32, -bound, bound)
    b_hh = jax.random.uniform(k_bhh, (4 * H,), jnp.float32, -bound, bound)

    tokens = jax.random.randint(k_tok, (B, S), 0, V, dtype=jnp.int32)

    # time_block=8 -> grid=(2,): also exercises the h/c scratch carry across grid steps.
    out = lm_lstm_forward(tokens, emb_weight, w_ih, w_hh, b_ih, b_hh, time_block=8)
    out = jax.block_until_ready(out)
    assert out.shape == (B, V, S), out.shape

    ref = _reference_forward(tokens, emb_weight, w_ih, w_hh, b_ih, b_hh)
    # bf16 MXU inputs with f32 accumulation: allow ~3% of the logit dynamic range.
    max_err = float(jnp.max(jnp.abs(out - ref)))
    ref_scale = float(jnp.max(jnp.abs(ref)))
    assert max_err <= 3e-2 * ref_scale + 3e-2, (max_err, ref_scale)

    print("KERNEL_OK")
</pallas_src>

<mosaic_0001>
module attributes {stable_mosaic.version = 11 : i64} {
  func.func @_input_proj_kernel(%arg0: i32, %arg1: memref<128x128xbf16, #tpu.memory_space<vmem>>, %arg2: memref<128x512xbf16, #tpu.memory_space<vmem>>, %arg3: memref<1x512xf32, #tpu.memory_space<vmem>>, %arg4: memref<128x512xf32, #tpu.memory_space<vmem>>) attributes {dimension_semantics = [#tpu.dimension_semantics<parallel>], iteration_bounds = array<i64: 1>, scalar_prefetch = 0 : i64, scratch_operands = 0 : i64, tpu.core_type = #tpu.core_type<tc>, window_params = [{transform_indices = @transform_0, window_bounds = array<i64: 128, 128>}, {pipeline_mode = #tpu.pipeline_mode<synchronous>, transform_indices = @transform_1, window_bounds = array<i64: 128, 512>}, {pipeline_mode = #tpu.pipeline_mode<synchronous>, transform_indices = @transform_2, window_bounds = array<i64: 1, 512>}, {transform_indices = @transform_3, window_bounds = array<i64: 128, 512>}]} {
    %c0 = arith.constant 0 : index
    %c0_0 = arith.constant 0 : index
    %0 = vector.load %arg1[%c0, %c0_0] : memref<128x128xbf16, #tpu.memory_space<vmem>>, vector<128x128xbf16>
    %c0_1 = arith.constant 0 : index
    %c0_2 = arith.constant 0 : index
    %1 = vector.load %arg2[%c0_1, %c0_2] : memref<128x512xbf16, #tpu.memory_space<vmem>>, vector<128x512xbf16>
    %cst = arith.constant dense<0.000000e+00> : vector<128x512xf32>
    %2 = tpu.matmul %0, %1, %cst {dimension_numbers = #tpu.dot_dimension_numbers<[1], [0], [0], [1], [0, 0, 1, 1], [], []>} : vector<128x128xbf16>, vector<128x512xbf16>, vector<128x512xf32> -> vector<128x512xf32>
    %c0_3 = arith.constant 0 : index
    %c0_4 = arith.constant 0 : index
    %3 = vector.load %arg3[%c0_3, %c0_4] : memref<1x512xf32, #tpu.memory_space<vmem>>, vector<1x512xf32>
    %4 = vector.broadcast %3 : vector<1x512xf32> to vector<128x512xf32>
    %5 = arith.addf %2, %4 : vector<128x512xf32>
    %c0_5 = arith.constant 0 : index
    %c0_6 = arith.constant 0 : index
    %6 = vector.load %arg4[%c0_5, %c0_6] : memref<128x512xf32, #tpu.memory_space<vmem>>, vector<128x512xf32>
    tpu.vector_store %arg4[%c0_5, %c0_6], %5 {strides = array<i32>} : memref<128x512xf32, #tpu.memory_space<vmem>>, vector<128x512xf32>,
    return
  }
  func.func @transform_0(%arg0: i32) -> (i32, i32) {
    %c0_i32 = arith.constant 0 : i32
    %c0_i32_0 = arith.constant 0 : i32
    return %arg0, %c0_i32 : i32, i32
  }
  func.func @transform_1(%arg0: i32) -> (i32, i32) {
    %c0_i32 = arith.constant 0 : i32
    %c0_i32_0 = arith.constant 0 : i32
    %c0_i32_1 = arith.constant 0 : i32
    return %c0_i32, %c0_i32_0 : i32, i32
  }
  func.func @transform_2(%arg0: i32) -> (i32, i32) {
    %c0_i32 = arith.constant 0 : i32
    %c0_i32_0 = arith.constant 0 : i32
    %c0_i32_1 = arith.constant 0 : i32
    return %c0_i32, %c0_i32_0 : i32, i32
  }
  func.func @transform_3(%arg0: i32) -> (i32, i32) {
    %c0_i32 = arith.constant 0 : i32
    %c0_i32_0 = arith.constant 0 : i32
    return %arg0, %c0_i32 : i32, i32
  }
}

</mosaic_0001>

<llo_original>
// kernel: tpu_custom_call.1
$region0: #{tpu_custom_call.1}
  #allocation0 [shape = 'u32[]', space=smem, size = 0x4, offset = 0x4, fixed_abs, tag = 'smem constant byte address 0x4 - core index']
  #allocation1 [shape = 'u32[144,128]{1,0:T(1,128)}', space=vmem, size = 0x12000, scoped, tag = 'internal scratch']
  %s0 = inlined_call_operand.hbm [shape: bf16[128,128], index: 0, kind: input, shape index: {}]
  %s1 = inlined_call_operand.hbm [shape: bf16[128,512], index: 1, kind: input, shape index: {}]
  %s2 = inlined_call_operand.vmem [shape: f32[1,512], index: 2, kind: input, shape index: {}]
  %s3 = inlined_call_operand.hbm [shape: f32[128,512], index: 3, kind: output, shape index: {}]
  %s4 = sld [smem:[#allocation0]]
  $region30: #{tpu_custom_call.1} parent=0
    _
  %s6 = ssub.s32 1, %s4
  %s7 = scalar_select 0, %s6, %s4
  $region1: #{tpu_custom_call.1} parent=0
    #allocation2 [shape = 'u8[32768]{0}', space=vmem, size = 0x8000, scoped, tag = 'input window, operand 0, single buffered']
    #allocation3 [shape = 's32[1]{0}', space=sflag, size = 0x4, scoped, tag = 'scoped memory for tpu_custom_call.1']
    #allocation4 [shape = 's32[1]{0}', space=sflag, size = 0x4, scoped, tag = 'scoped memory for tpu_custom_call.1']
    #allocation5 [shape = 'u8[131072]{0}', space=vmem, size = 0x20000, scoped, tag = 'input window, operand 1, single buffered']
    #allocation6 [shape = 's32[1]{0}', space=sflag, size = 0x4, scoped, tag = 'scoped memory for tpu_custom_call.1']
    #allocation7 [shape = 'u8[262144]{0}', space=vmem, size = 0x40000, scoped, tag = 'output window, operand 0, single buffered']
    %8 = vsyncpa [#allocation3], 0
    %9 = vsyncpa [#allocation6], 0
    %10 = vsyncpa [#allocation4], 0
    // Predicated region
    $region2: #{tpu_custom_call.1} parent=1 // pred_check
      _
    $region3: #{tpu_custom_call.1} parent=1 // pred_check_branch
      %12 = sbr.rel (0) target = $region5
    $region4: #{tpu_custom_call.1} parent=1 // pred_region
      %s14 = ssub.s32 1024, 1024
      %15 = vsyncadd [#allocation3], %s14
      %s16 = sshll.u32 [#allocation2], 4
      %s17 = int_to_ptr.vmem [resolvable:$true] %s16
      %22 = dma.hbm_to_vmem [thread:$0]  %s0, 1024, %s17, [#allocation3], 64, 64, 4
    $region5: #{tpu_custom_call.1} parent=1 // pred_fallthru
      _
    // Predicated region
    $region6: #{tpu_custom_call.1} parent=1 // pred_check
      _
    $region7: #{tpu_custom_call.1} parent=1 // pred_check_branch
      %24 = sbr.rel (0) target = $region9
    $region8: #{tpu_custom_call.1} parent=1 // pred_region
      %s26 = ssub.s32 4096, 4096
      %27 = vsyncadd [#allocation6], %s26
      %s28 = sshll.u32 [#allocation5], 4
      %s29 = int_to_ptr.vmem [resolvable:$true] %s28
      %34 = dma.hbm_to_vmem [thread:$0]  %s1, 4096, %s29, [#allocation6], 256, 256, 16
    $region9: #{tpu_custom_call.1} parent=1 // pred_fallthru
      _
    // Predicated region
    $region10: #{tpu_custom_call.1} parent=1 // pred_check
      _
    $region11: #{tpu_custom_call.1} parent=1 // pred_check_branch
      %36 = sbr.rel (0) target = $region13
    $region12: #{tpu_custom_call.1} parent=1 // pred_region
      _
    $region13: #{tpu_custom_call.1} parent=1 // pred_fallthru
      _
    // Predicated region
    $region14: #{tpu_custom_call.1} parent=1 // pred_check
      _
    $region15: #{tpu_custom_call.1} parent=1 // pred_check_branch
      %38 = sbr.rel (0) target = $region17
    $region16: #{tpu_custom_call.1} parent=1 // pred_region
      %39 = dma.done [#allocation3], 1024
    $region17: #{tpu_custom_call.1} parent=1 // pred_fallthru
      _
    // Predicated region
    $region18: #{tpu_custom_call.1} parent=1 // pred_check
      _
    $region19: #{tpu_custom_call.1} parent=1 // pred_check_branch
      %41 = sbr.rel (0) target = $region21
    $region20: #{tpu_custom_call.1} parent=1 // pred_region
      %42 = dma.done [#allocation6], 4096
    $region21: #{tpu_custom_call.1} parent=1 // pred_fallthru
      _
    %v44 = vld [vmem:[#allocation2] sm:$0xf]
    %v45 = vld [vmem:[#allocation2 + $0x4] sm:$0xf]
    %v46 = vld [vmem:[#allocation2 + $0x8] sm:$0xf]
    %v47 = vld [vmem:[#allocation2 + $0xc] sm:$0xf]
    %v48 = vld [vmem:[#allocation2 + $0x10] sm:$0xf]
    %v49 = vld [vmem:[#allocation2 + $0x14] sm:$0xf]
    %v50 = vld [vmem:[#allocation2 + $0x18] sm:$0xf]
    %v51 = vld [vmem:[#allocation2 + $0x1c] sm:$0xf]
    %v52 = vld [vmem:[#allocation2 + $0x20] sm:$0xf]
    %v53 = vld [vmem:[#allocation2 + $0x24] sm:$0xf]
    %v54 = vld [vmem:[#allocation2 + $0x28] sm:$0xf]
    %v55 = vld [vmem:[#allocation2 + $0x2c] sm:$0xf]
    %v56 = vld [vmem:[#allocation2 + $0x30] sm:$0xf]
    %v57 = vld [vmem:[#allocation2 + $0x34] sm:$0xf]
    %v58 = vld [vmem:[#allocation2 + $0x38] sm:$0xf]
    %v59 = vld [vmem:[#allocation2 + $0x3c] sm:$0xf]
    %v60 = vld [vmem:[#allocation5] sm:$0xff]
    %v61 = vld [vmem:[#allocation5 + $0x8] sm:$0xff]
    %v62 = vld [vmem:[#allocation5 + $0x10] sm:$0xff]
    %v63 = vld [vmem:[#allocation5 + $0x18] sm:$0xff]
    %v64 = vld [vmem:[#allocation5 + $0x20] sm:$0xff]
    %v65 = vld [vmem:[#allocation5 + $0x28] sm:$0xff]
    %v66 = vld [vmem:[#allocation5 + $0x30] sm:$0xff]
    %v67 = vld [vmem:[#allocation5 + $0x38] sm:$0xff]
    %v68 = vld [vmem:[#allocation5 + $0x40] sm:$0xff]
    %v69 = vld [vmem:[#allocation5 + $0x48] sm:$0xff]
    %v70 = vld [vmem:[#allocation5 + $0x50] sm:$0xff]
    %v71 = vld [vmem:[#allocation5 + $0x58] sm:$0xff]
    %v72 = vld [vmem:[#allocation5 + $0x60] sm:$0xff]
    %v73 = vld [vmem:[#allocation5 + $0x68] sm:$0xff]
    %v74 = vld [vmem:[#allocation5 + $0x70] sm:$0xff]
    %v75 = vld [vmem:[#allocation5 + $0x78] sm:$0xff]
    %v76 = vld [vmem:[#allocation5 + $0x80] sm:$0xff]
    %v77 = vld [vmem:[#allocation5 + $0x88] sm:$0xff]
    %v78 = vld [vmem:[#allocation5 + $0x90] sm:$0xff]
    %v79 = vld [vmem:[#allocation5 + $0x98] sm:$0xff]
    %v80 = vld [vmem:[#allocation5 + $0xa0] sm:$0xff]
    %v81 = vld [vmem:[#allocation5 + $0xa8] sm:$0xff]
    %v82 = vld [vmem:[#allocation5 + $0xb0] sm:$0xff]
    %v83 = vld [vmem:[#allocation5 + $0xb8] sm:$0xff]
    %v84 = vld [vmem:[#allocation5 + $0xc0] sm:$0xff]
    %v85 = vld [vmem:[#allocation5 + $0xc8] sm:$0xff]
    %v86 = vld [vmem:[#allocation5 + $0xd0] sm:$0xff]
    %v87 = vld [vmem:[#allocation5 + $0xd8] sm:$0xff]
    %v88 = vld [vmem:[#allocation5 + $0xe0] sm:$0xff]
    %v89 = vld [vmem:[#allocation5 + $0xe8] sm:$0xff]
    %v90 = vld [vmem:[#allocation5 + $0xf0] sm:$0xff]
    %v91 = vld [vmem:[#allocation5 + $0xf8] sm:$0xff]
    %v92 = vld [vmem:[%s2] sm:$0xf]
    %v94 = vlaneseq
    %v95 = vshrl.u32 %v94, 7
    %v96 = vsub.s32 0, %v95
    %v97 = vrot.slane %v92, %v96
    %v98 = vlaneseq
    %v99 = vshrl.u32 %v98, 7
    %v100 = vsub.s32 1, %v99
    %v101 = vrot.slane %v92, %v100
    %v102 = vlaneseq
    %v103 = vshrl.u32 %v102, 7
    %v104 = vsub.s32 2, %v103
    %v105 = vrot.slane %v92, %v104
    %v106 = vlaneseq
    %v107 = vshrl.u32 %v106, 7
    %v108 = vsub.s32 3, %v107
    %v109 = vrot.slane %v92, %v108
    %v130 = vunpack.c.l.b16 %v44
    %v131 = vunpack.c.l.b16 %v45
    %v132 = vunpack.c.l.b16 %v46
    %v133 = vunpack.c.l.b16 %v47
    %v134 = vunpack.c.l.b16 %v48
    %v135 = vunpack.c.l.b16 %v49
    %v136 = vunpack.c.l.b16 %v50
    %v137 = vunpack.c.l.b16 %v51
    %v138 = vunpack.c.l.b16 %v52
    %v139 = vunpack.c.l.b16 %v53
    %v140 = vunpack.c.l.b16 %v54
    %v141 = vunpack.c.l.b16 %v55
    %v142 = vunpack.c.l.b16 %v56
    %v143 = vunpack.c.l.b16 %v57
    %v144 = vunpack.c.l.b16 %v58
    %v145 = vunpack.c.l.b16 %v59
    %v146 = vpack.c.b16 %v131, %v130
    %v147 = vpack.c.b16 %v133, %v132
    %v148 = vpack.c.b16 %v135, %v134
    %v149 = vpack.c.b16 %v137, %v136
    %v150 = vpack.c.b16 %v139, %v138
    %v151 = vpack.c.b16 %v141, %v140
    %v152 = vpack.c.b16 %v143, %v142
    %v153 = vpack.c.b16 %v145, %v144
    %v194 = vunpack.c.l.b16 %v60
    %v195 = vunpack.c.h.b16 %v60
    %v196 = vunpack.c.l.b16 %v61
    %v197 = vunpack.c.h.b16 %v61
    %v198 = vunpack.c.l.b16 %v62
    %v199 = vunpack.c.h.b16 %v62
    %v200 = vunpack.c.l.b16 %v63
    %v201 = vunpack.c.h.b16 %v63
    %v202 = vunpack.c.l.b16 %v64
    %v203 = vunpack.c.h.b16 %v64
    %v204 = vunpack.c.l.b16 %v65
    %v205 = vunpack.c.h.b16 %v65
    %v206 = vunpack.c.l.b16 %v66
    %v207 = vunpack.c.h.b16 %v66
    %v208 = vunpack.c.l.b16 %v67
    %v209 = vunpack.c.h.b16 %v67
    %v210 = vunpack.c.l.b16 %v68
    %v211 = vunpack.c.h.b16 %v68
    %v212 = vunpack.c.l.b16 %v69
    %v213 = vunpack.c.h.b16 %v69
    %v214 = vunpack.c.l.b16 %v70
    %v215 = vunpack.c.h.b16 %v70
    %v216 = vunpack.c.l.b16 %v71
    %v217 = vunpack.c.h.b16 %v71
    %v218 = vunpack.c.l.b16 %v72
    %v219 = vunpack.c.h.b16 %v72
    %v220 = vunpack.c.l.b16 %v73
    %v221 = vunpack.c.h.b16 %v73
    %v222 = vunpack.c.l.b16 %v74
    %v223 = vunpack.c.h.b16 %v74
    %v224 = vunpack.c.l.b16 %v75
    %v225 = vunpack.c.h.b16 %v75
    %v226 = vunpack.c.l.b16 %v76
    %v227 = vunpack.c.h.b16 %v76
    %v228 = vunpack.c.l.b16 %v77
    %v229 = vunpack.c.h.b16 %v77
    %v230 = vunpack.c.l.b16 %v78
    %v231 = vunpack.c.h.b16 %v78
    %v232 = vunpack.c.l.b16 %v79
    %v233 = vunpack.c.h.b16 %v79
    %v234 = vunpack.c.l.b16 %v80
    %v235 = vunpack.c.h.b16 %v80
    %v236 = vunpack.c.l.b16 %v81
    %v237 = vunpack.c.h.b16 %v81
    %v238 = vunpack.c.l.b16 %v82
    %v239 = vunpack.c.h.b16 %v82
    %v240 = vunpack.c.l.b16 %v83
    %v241 = vunpack.c.h.b16 %v83
    %v242 = vunpack.c.l.b16 %v84
    %v243 = vunpack.c.h.b16 %v84
    %v244 = vunpack.c.l.b16 %v85
    %v245 = vunpack.c.h.b16 %v85
    %v246 = vunpack.c.l.b16 %v86
    %v247 = vunpack.c.h.b16 %v86
    %v248 = vunpack.c.l.b16 %v87
    %v249 = vunpack.c.h.b16 %v87
    %v250 = vunpack.c.l.b16 %v88
    %v251 = vunpack.c.h.b16 %v88
    %v252 = vunpack.c.l.b16 %v89
    %v253 = vunpack.c.h.b16 %v89
    %v254 = vunpack.c.l.b16 %v90
    %v255 = vunpack.c.h.b16 %v90
    %v256 = vunpack.c.l.b16 %v91
    %v257 = vunpack.c.h.b16 %v91
    %v258 = vpack.c.b16 %v198, %v194
    %v259 = vpack.c.b16 %v199, %v195
    %v260 = vpack.c.b16 %v200, %v196
    %v261 = vpack.c.b16 %v201, %v197
    %v262 = vpack.c.b16 %v206, %v202
    %v263 = vpack.c.b16 %v207, %v203
    %v264 = vpack.c.b16 %v208, %v204
    %v265 = vpack.c.b16 %v209, %v205
    %v266 = vpack.c.b16 %v214, %v210
    %v267 = vpack.c.b16 %v215, %v211
    %v268 = vpack.c.b16 %v216, %v212
    %v269 = vpack.c.b16 %v217, %v213
    %v270 = vpack.c.b16 %v222, %v218
    %v271 = vpack.c.b16 %v223, %v219
    %v272 = vpack.c.b16 %v224, %v220
    %v273 = vpack.c.b16 %v225, %v221
    %v274 = vpack.c.b16 %v230, %v226
    %v275 = vpack.c.b16 %v231, %v227
    %v276 = vpack.c.b16 %v232, %v228
    %v277 = vpack.c.b16 %v233, %v229
    %v278 = vpack.c.b16 %v238, %v234
    %v279 = vpack.c.b16 %v239, %v235
    %v280 = vpack.c.b16 %v240, %v236
    %v281 = vpack.c.b16 %v241, %v237
    %v282 = vpack.c.b16 %v246, %v242
    %v283 = vpack.c.b16 %v247, %v243
    %v284 = vpack.c.b16 %v248, %v244
    %v285 = vpack.c.b16 %v249, %v245
    %v286 = vpack.c.b16 %v254, %v250
    %v287 = vpack.c.b16 %v255, %v251
    %v288 = vpack.c.b16 %v256, %v252
    %v289 = vpack.c.b16 %v257, %v253
    %322 = vmatprep.subr.bf16.mxu0 %v259
    %323 = vmatpush1.bf16.msra.mxu0 %v258
    %324 = vmatprep.subr.bf16.mxu0 %v263
    %325 = vmatpush1.bf16.msra.mxu0 %v262
    %326 = vmatprep.subr.bf16.mxu0 %v267
    %327 = vmatpush1.bf16.msra.mxu0 %v266
    %328 = vmatprep.subr.bf16.mxu0 %v271
    %329 = vmatpush1.bf16.msra.mxu0 %v270
    %330 = vmatprep.subr.bf16.mxu0 %v275
    %331 = vmatpush1.bf16.msra.mxu0 %v274
    %332 = vmatprep.subr.bf16.mxu0 %v279
    %333 = vmatpush1.bf16.msra.mxu0 %v278
    %334 = vmatprep.subr.bf16.mxu0 %v283
    %335 = vmatpush1.bf16.msra.mxu0 %v282
    %336 = vmatprep.subr.bf16.mxu0 %v287
    %337 = vmatpush1.bf16.msra.mxu0 %v286
    %338 = vmatprep.subr.bf16.mxu0 0
    %339 = vmatpush1.bf16.msra.mxu0 0
    %340 = vmatprep.subr.bf16.mxu0 0
    %341 = vmatpush1.bf16.msra.mxu0 0
    %342 = vmatprep.subr.bf16.mxu0 0
    %343 = vmatpush1.bf16.msra.mxu0 0
    %344 = vmatprep.subr.bf16.mxu0 0
    %345 = vmatpush1.bf16.msra.mxu0 0
    %346 = vmatprep.subr.bf16.mxu0 0
    %347 = vmatpush1.bf16.msra.mxu0 0
    %348 = vmatprep.subr.bf16.mxu0 0
    %349 = vmatpush1.bf16.msra.mxu0 0
    %350 = vmatprep.subr.bf16.mxu0 0
    %351 = vmatpush1.bf16.msra.mxu0 0
    %352 = vmatprep.subr.bf16.mxu0 0
    %353 = vmatpush1.bf16.msra.mxu0 0
    %354 = vmatprep.mubr.bf16.mxu0 0
    %355 = vmatmul.mubr.bf16.gmra.mrb[0].mxu0 %v146
    %v356 = vpop.f32.mrb[0].mxu0
    %v357 = vadd.f32 %v97, %v356
    %v358 = vpop.f32.mrb[0].mxu0
    %v359 = vadd.f32 %v101, %v358
    %v360 = vpop.f32.mrb[0].mxu0
    %v361 = vadd.f32 %v97, %v360
    %v362 = vpop.f32.mrb[0].mxu0
    %v363 = vadd.f32 %v101, %v362
    %364 = vmatprep.mubr.bf16.mxu0 0
    %365 = vmatmul.mubr.bf16.gmra.mrb[0].mxu0 %v147
    %v366 = vpop.f32.mrb[0].mxu0
    %v367 = vadd.f32 %v97, %v366
    %v368 = vpop.f32.mrb[0].mxu0
    %v369 = vadd.f32 %v101, %v368
    %v370 = vpop.f32.mrb[0].mxu0
    %v371 = vadd.f32 %v97, %v370
    %v372 = vpop.f32.mrb[0].mxu0
    %v373 = vadd.f32 %v101, %v372
    %374 = vmatprep.mubr.bf16.mxu0 0
    %375 = vmatmul.mubr.bf16.gmra.mrb[0].mxu0 %v148
    %v376 = vpop.f32.mrb[0].mxu0
    %v377 = vadd.f32 %v97, %v376
    %v378 = vpop.f32.mrb[0].mxu0
    %v379 = vadd.f32 %v101, %v378
    %v380 = vpop.f32.mrb[0].mxu0
    %v381 = vadd.f32 %v97, %v380
    %v382 = vpop.f32.mrb[0].mxu0
    %v383 = vadd.f32 %v101, %v382
    %384 = vmatprep.mubr.bf16.mxu0 0
    %385 = vmatmul.mubr.bf16.gmra.mrb[0].mxu0 %v149
    %v386 = vpop.f32.mrb[0].mxu0
    %v387 = vadd.f32 %v97, %v386
    %v388 = vpop.f32.mrb[0].mxu0
    %v389 = vadd.f32 %v101, %v388
    %v390 = vpop.f32.mrb[0].mxu0
    %v391 = vadd.f32 %v97, %v390
    %v392 = vpop.f32.mrb[0].mxu0
    %v393 = vadd.f32 %v101, %v392
    %394 = vmatprep.mubr.bf16.mxu0 0
    %395 = vmatmul.mubr.bf16.gmra.mrb[0].mxu0 %v150
    %v396 = vpop.f32.mrb[0].mxu0
    %v397 = vadd.f32 %v97, %v396
    %v398 = vpop.f32.mrb[0].mxu0
    %v399 = vadd.f32 %v101, %v398
    %v400 = vpop.f32.mrb[0].mxu0
    %v401 = vadd.f32 %v97, %v400
    %v402 = vpop.f32.mrb[0].mxu0
    %v403 = vadd.f32 %v101, %v402
    %404 = vmatprep.mubr.bf16.mxu0 0
    %405 = vmatmul.mubr.bf16.gmra.mrb[0].mxu0 %v151
    %v406 = vpop.f32.mrb[0].mxu0
    %v407 = vadd.f32 %v97, %v406
    %v408 = vpop.f32.mrb[0].mxu0
    %v409 = vadd.f32 %v101, %v408
    %v410 = vpop.f32.mrb[0].mxu0
    %v411 = vadd.f32 %v97, %v410
    %v412 = vpop.f32.mrb[0].mxu0
    %v413 = vadd.f32 %v101, %v412
    %414 = vmatprep.mubr.bf16.mxu0 0
    %415 = vmatmul.mubr.bf16.gmra.mrb[0].mxu0 %v152
    %v416 = vpop.f32.mrb[0].mxu0
    %v417 = vadd.f32 %v97, %v416
    %v418 = vpop.f32.mrb[0].mxu0
    %v419 = vadd.f32 %v101, %v418
    %v420 = vpop.f32.mrb[0].mxu0
    %v421 = vadd.f32 %v97, %v420
    %v422 = vpop.f32.mrb[0].mxu0
    %v423 = vadd.f32 %v101, %v422
    %424 = vmatprep.mubr.bf16.mxu0 0
    %425 = vmatmul.mubr.bf16.gmra.mrb[0].mxu0 %v153
    %v426 = vpop.f32.mrb[0].mxu0
    %v427 = vadd.f32 %v97, %v426
    %v428 = vpop.f32.mrb[0].mxu0
    %v429 = vadd.f32 %v101, %v428
    %v430 = vpop.f32.mrb[0].mxu0
    %v431 = vadd.f32 %v97, %v430
    %v432 = vpop.f32.mrb[0].mxu0
    %v433 = vadd.f32 %v101, %v432
    %434 = vdwg.mxu0
    %435 = vmatprep.subr.bf16.mxu0 %v261
    %436 = vmatpush1.bf16.msra.mxu0 %v260
    %437 = vmatprep.subr.bf16.mxu0 %v265
    %438 = vmatpush1.bf16.msra.mxu0 %v264
    %439 = vmatprep.subr.bf16.mxu0 %v269
    %440 = vmatpush1.bf16.msra.mxu0 %v268
    %441 = vmatprep.subr.bf16.mxu0 %v273
    %442 = vmatpush1.bf16.msra.mxu0 %v272
    %443 = vmatprep.subr.bf16.mxu0 %v277
    %444 = vmatpush1.bf16.msra.mxu0 %v276
    %445 = vmatprep.subr.bf16.mxu0 %v281
    %446 = vmatpush1.bf16.msra.mxu0 %v280
    %447 = vmatprep.subr.bf16.mxu0 %v285
    %448 = vmatpush1.bf16.msra.mxu0 %v284
    %449 = vmatprep.subr.bf16.mxu0 %v289
    %450 = vmatpush1.bf16.msra.mxu0 %v288
    %451 = vmatprep.subr.bf16.mxu0 0
    %452 = vmatpush1.bf16.msra.mxu0 0
    %453 = vmatprep.subr.bf16.mxu0 0
    %454 = vmatpush1.bf16.msra.mxu0 0
    %455 = vmatprep.subr.bf16.mxu0 0
    %456 = vmatpush1.bf16.msra.mxu0 0
    %457 = vmatprep.subr.bf16.mxu0 0
    %458 = vmatpush1.bf16.msra.mxu0 0
    %459 = vmatprep.subr.bf16.mxu0 0
    %460 = vmatpush1.bf16.msra.mxu0 0
    %461 = vmatprep.subr.bf16.mxu0 0
    %462 = vmatpush1.bf16.msra.mxu0 0
    %463 = vmatprep.subr.bf16.mxu0 0
    %464 = vmatpush1.bf16.msra.mxu0 0
    %465 = vmatprep.subr.bf16.mxu0 0
    %466 = vmatpush1.bf16.msra.mxu0 0
    %467 = vmatprep.mubr.bf16.mxu0 0
    %468 = vmatmul.mubr.bf16.gmra.mrb[0].mxu0 %v146
    %v469 = vpop.f32.mrb[0].mxu0
    %v470 = vadd.f32 %v105, %v469
    %v471 = vpop.f32.mrb[0].mxu0
    %v472 = vadd.f32 %v109, %v471
    %v473 = vpop.f32.mrb[0].mxu0
    %v474 = vadd.f32 %v105, %v473
    %v475 = vpop.f32.mrb[0].mxu0
    %v476 = vadd.f32 %v109, %v475
    %477 = vmatprep.mubr.bf16.mxu0 0
    %478 = vmatmul.mubr.bf16.gmra.mrb[0].mxu0 %v147
    %v479 = vpop.f32.mrb[0].mxu0
    %v480 = vadd.f32 %v105, %v479
    %v481 = vpop.f32.mrb[0].mxu0
    %v482 = vadd.f32 %v109, %v481
    %v483 = vpop.f32.mrb[0].mxu0
    %v484 = vadd.f32 %v105, %v483
    %v485 = vpop.f32.mrb[0].mxu0
    %v486 = vadd.f32 %v109, %v485
    %487 = vmatprep.mubr.bf16.mxu0 0
    %488 = vmatmul.mubr.bf16.gmra.mrb[0].mxu0 %v148
    %v489 = vpop.f32.mrb[0].mxu0
    %v490 = vadd.f32 %v105, %v489
    %v491 = vpop.f32.mrb[0].mxu0
    %v492 = vadd.f32 %v109, %v491
    %v493 = vpop.f32.mrb[0].mxu0
    %v494 = vadd.f32 %v105, %v493
    %v495 = vpop.f32.mrb[0].mxu0
    %v496 = vadd.f32 %v109, %v495
    %497 = vmatprep.mubr.bf16.mxu0 0
    %498 = vmatmul.mubr.bf16.gmra.mrb[0].mxu0 %v149
    %v499 = vpop.f32.mrb[0].mxu0
    %v500 = vadd.f32 %v105, %v499
    %v501 = vpop.f32.mrb[0].mxu0
    %v502 = vadd.f32 %v109, %v501
    %v503 = vpop.f32.mrb[0].mxu0
    %v504 = vadd.f32 %v105, %v503
    %v505 = vpop.f32.mrb[0].mxu0
    %v506 = vadd.f32 %v109, %v505
    %507 = vmatprep.mubr.bf16.mxu0 0
    %508 = vmatmul.mubr.bf16.gmra.mrb[0].mxu0 %v150
    %v509 = vpop.f32.mrb[0].mxu0
    %v510 = vadd.f32 %v105, %v509
    %v511 = vpop.f32.mrb[0].mxu0
    %v512 = vadd.f32 %v109, %v511
    %v513 = vpop.f32.mrb[0].mxu0
    %v514 = vadd.f32 %v105, %v513
    %v515 = vpop.f32.mrb[0].mxu0
    %v516 = vadd.f32 %v109, %v515
    %517 = vmatprep.mubr.bf16.mxu0 0
    %518 = vmatmul.mubr.bf16.gmra.mrb[0].mxu0 %v151
    %v519 = vpop.f32.mrb[0].mxu0
    %v520 = vadd.f32 %v105, %v519
    %v521 = vpop.f32.mrb[0].mxu0
    %v522 = vadd.f32 %v109, %v521
    %v523 = vpop.f32.mrb[0].mxu0
    %v524 = vadd.f32 %v105, %v523
    %v525 = vpop.f32.mrb[0].mxu0
    %v526 = vadd.f32 %v109, %v525
    %527 = vmatprep.mubr.bf16.mxu0 0
    %528 = vmatmul.mubr.bf16.gmra.mrb[0].mxu0 %v152
    %v529 = vpop.f32.mrb[0].mxu0
    %v530 = vadd.f32 %v105, %v529
    %v531 = vpop.f32.mrb[0].mxu0
    %v532 = vadd.f32 %v109, %v531
    %v533 = vpop.f32.mrb[0].mxu0
    %v534 = vadd.f32 %v105, %v533
    %v535 = vpop.f32.mrb[0].mxu0
    %v536 = vadd.f32 %v109, %v535
    %537 = vmatprep.mubr.bf16.mxu0 0
    %538 = vmatmul.mubr.bf16.gmra.mrb[0].mxu0 %v153
    %v539 = vpop.f32.mrb[0].mxu0
    %v540 = vadd.f32 %v105, %v539
    %v541 = vpop.f32.mrb[0].mxu0
    %v542 = vadd.f32 %v109, %v541
    %v543 = vpop.f32.mrb[0].mxu0
    %v544 = vadd.f32 %v105, %v543
    %v545 = vpop.f32.mrb[0].mxu0
    %v546 = vadd.f32 %v109, %v545
    %547 = vdwg.mxu0
    %548 = vst [vmem:[#allocation7] sm:$0xff] %v357
    %549 = vst [vmem:[#allocation7 + $0x8] sm:$0xff] %v359
    %550 = vst [vmem:[#allocation7 + $0x10] sm:$0xff] %v470
    %551 = vst [vmem:[#allocation7 + $0x18] sm:$0xff] %v472
    %552 = vst [vmem:[#allocation7 + $0x20] sm:$0xff] %v361
    %553 = vst [vmem:[#allocation7 + $0x28] sm:$0xff] %v363
    %554 = vst [vmem:[#allocation7 + $0x30] sm:$0xff] %v474
    %555 = vst [vmem:[#allocation7 + $0x38] sm:$0xff] %v476
    %556 = vst [vmem:[#allocation7 + $0x40] sm:$0xff] %v367
    %557 = vst [vmem:[#allocation7 + $0x48] sm:$0xff] %v369
    %558 = vst [vmem:[#allocation7 + $0x50] sm:$0xff] %v480
    %559 = vst [vmem:[#allocation7 + $0x58] sm:$0xff] %v482
    %560 = vst [vmem:[#allocation7 + $0x60] sm:$0xff] %v371
    %561 = vst [vmem:[#allocation7 + $0x68] sm:$0xff] %v373
    %562 = vst [vmem:[#allocation7 + $0x70] sm:$0xff] %v484
    %563 = vst [vmem:[#allocation7 + $0x78] sm:$0xff] %v486
    %564 = vst [vmem:[#allocation7 + $0x80] sm:$0xff] %v377
    %565 = vst [vmem:[#allocation7 + $0x88] sm:$0xff] %v379
    %566 = vst [vmem:[#allocation7 + $0x90] sm:$0xff] %v490
    %567 = vst [vmem:[#allocation7 + $0x98] sm:$0xff] %v492
    %568 = vst [vmem:[#allocation7 + $0xa0] sm:$0xff] %v381
    %569 = vst [vmem:[#allocation7 + $0xa8] sm:$0xff] %v383
    %570 = vst [vmem:[#allocation7 + $0xb0] sm:$0xff] %v494
    %571 = vst [vmem:[#allocation7 + $0xb8] sm:$0xff] %v496
    %572 = vst [vmem:[#allocation7 + $0xc0] sm:$0xff] %v387
    %573 = vst [vmem:[#allocation7 + $0xc8] sm:$0xff] %v389
    %574 = vst [vmem:[#allocation7 + $0xd0] sm:$0xff] %v500
    %575 = vst [vmem:[#allocation7 + $0xd8] sm:$0xff] %v502
    %576 = vst [vmem:[#allocation7 + $0xe0] sm:$0xff] %v391
    %577 = vst [vmem:[#allocation7 + $0xe8] sm:$0xff] %v393
    %578 = vst [vmem:[#allocation7 + $0xf0] sm:$0xff] %v504
    %579 = vst [vmem:[#allocation7 + $0xf8] sm:$0xff] %v506
    %580 = vst [vmem:[#allocation7 + $0x100] sm:$0xff] %v397
    %581 = vst [vmem:[#allocation7 + $0x108] sm:$0xff] %v399
    %582 = vst [vmem:[#allocation7 + $0x110] sm:$0xff] %v510
    %583 = vst [vmem:[#allocation7 + $0x118] sm:$0xff] %v512
    %584 = vst [vmem:[#allocation7 + $0x120] sm:$0xff] %v401
    %585 = vst [vmem:[#allocation7 + $0x128] sm:$0xff] %v403
    %586 = vst [vmem:[#allocation7 + $0x130] sm:$0xff] %v514
    %587 = vst [vmem:[#allocation7 + $0x138] sm:$0xff] %v516
    %588 = vst [vmem:[#allocation7 + $0x140] sm:$0xff] %v407
    %589 = vst [vmem:[#allocation7 + $0x148] sm:$0xff] %v409
    %590 = vst [vmem:[#allocation7 + $0x150] sm:$0xff] %v520
    %591 = vst [vmem:[#allocation7 + $0x158] sm:$0xff] %v522
    %592 = vst [vmem:[#allocation7 + $0x160] sm:$0xff] %v411
    %593 = vst [vmem:[#allocation7 + $0x168] sm:$0xff] %v413
    %594 = vst [vmem:[#allocation7 + $0x170] sm:$0xff] %v524
    %595 = vst [vmem:[#allocation7 + $0x178] sm:$0xff] %v526
    %596 = vst [vmem:[#allocation7 + $0x180] sm:$0xff] %v417
    %597 = vst [vmem:[#allocation7 + $0x188] sm:$0xff] %v419
    %598 = vst [vmem:[#allocation7 + $0x190] sm:$0xff] %v530
    %599 = vst [vmem:[#allocation7 + $0x198] sm:$0xff] %v532
    %600 = vst [vmem:[#allocation7 + $0x1a0] sm:$0xff] %v421
    %601 = vst [vmem:[#allocation7 + $0x1a8] sm:$0xff] %v423
    %602 = vst [vmem:[#allocation7 + $0x1b0] sm:$0xff] %v534
    %603 = vst [vmem:[#allocation7 + $0x1b8] sm:$0xff] %v536
    %604 = vst [vmem:[#allocation7 + $0x1c0] sm:$0xff] %v427
    %605 = vst [vmem:[#allocation7 + $0x1c8] sm:$0xff] %v429
    %606 = vst [vmem:[#allocation7 + $0x1d0] sm:$0xff] %v540
    %607 = vst [vmem:[#allocation7 + $0x1d8] sm:$0xff] %v542
    %608 = vst [vmem:[#allocation7 + $0x1e0] sm:$0xff] %v431
    %609 = vst [vmem:[#allocation7 + $0x1e8] sm:$0xff] %v433
    %610 = vst [vmem:[#allocation7 + $0x1f0] sm:$0xff] %v544
    %611 = vst [vmem:[#allocation7 + $0x1f8] sm:$0xff] %v546
    // Predicated region
    $region22: #{tpu_custom_call.1} parent=1 // pred_check
      _
    $region23: #{tpu_custom_call.1} parent=1 // pred_check_branch
      %613 = sbr.rel (0) target = $region25
    $region24: #{tpu_custom_call.1} parent=1 // pred_region
      %s615 = ssub.s32 8192, 8192
      %616 = vsyncadd [#allocation4], %s615
      %s617 = sshll.u32 [#allocation7], 4
      %s618 = int_to_ptr.vmem [resolvable:$true] %s617
      %623 = dma.vmem_to_hbm [thread:$0]  %s618, 8192, %s3, [#allocation4], 512, 512, 32
    $region25: #{tpu_custom_call.1} parent=1 // pred_fallthru
      _
    // Predicated region
    $region26: #{tpu_custom_call.1} parent=1 // pred_check
      _
    $region27: #{tpu_custom_call.1} parent=1 // pred_check_branch
      %625 = sbr.rel (0) target = $region29
    $region28: #{tpu_custom_call.1} parent=1 // pred_region
      %626 = dma.done [#allocation4], 8192
    $region29: #{tpu_custom_call.1} parent=1 // pred_fallthru
      _
    %627 = vsyncpa [#allocation3], 1
    %628 = vsyncpa [#allocation6], 1
    %629 = vsyncpa [#allocation4], 1

</llo_original>
